<compile_context>
chip_gen: v5e
topology: v5e:2x2
jax: 0.10.0
libtpu: 0.0.40
codegen_flags: <defaults>
</compile_context>

<pallas_src>
import functools

import jax
import jax.numpy as jnp
from jax.experimental import pallas as pl
from jax.experimental.pallas import tpu as pltpu


def _round_up(x, m):
    return (x + m - 1) // m * m


def _choose_row_tile(n_rows, bytes_per_row, budget_bytes=8 * 2**20, max_tile=1024):
    """Largest multiple-of-8 divisor of n_rows (<= max_tile) whose double-buffered
    row working set fits budget_bytes.  None if no multiple-of-8 divisor exists."""
    divisors = [t for t in range(8, min(n_rows, max_tile) + 1, 8) if n_rows % t == 0]
    if not divisors:
        return None
    cap = max(8, budget_bytes // max(bytes_per_row, 1))
    fitting = [t for t in divisors if t <= cap]
    return max(fitting) if fitting else min(divisors)


# ----------------------------- Pallas kernel --------------------------------
def _patch_embed_kernel(x_ref, w_ref, pb_ref, o_ref, *, tl, pb_rows, pb_resident):
    # x_ref:  (TL, Kp)      bf16  patch rows for this row tile
    # w_ref:  (Kp, Hp)      bf16  reshaped conv weight (grid-invariant -> resident)
    # pb_ref: (pb_rows, Hp) f32   pos-enc + conv bias (full table when resident)
    # o_ref:  (TL, Hp)      output tile
    acc = jnp.dot(x_ref[...], w_ref[...], preferred_element_type=jnp.float32)
    if pb_resident and tl != pb_rows:
        # Whole pos table lives in VMEM; pick this tile's rows ((i*TL) mod L).
        row0 = pl.multiple_of((pl.program_id(0) * tl) % pb_rows, 8)
        pb = pb_ref[pl.ds(row0, tl), :]
    else:
        pb = pb_ref[...]
    o_ref[...] = (acc + pb).astype(o_ref.dtype)


def patch_embed_pallas(patches_flat, weight, pos_bias, out_dtype=jnp.float32):
    """patches_flat: (B*L, Kp) bf16; weight: (Kp, Hp) bf16; pos_bias: (L, Hp) f32.
    Returns (B*L, Hp) with out[r] = patches[r] @ W + pos_bias[r % L]."""
    R, Kp = patches_flat.shape
    Kp_w, Hp = weight.shape
    assert Kp == Kp_w
    L = pos_bias.shape[0]
    assert R % L == 0

    # Row tile sized against a VMEM budget (double-buffered bf16 in + f32 out rows).
    bytes_per_row = 2 * (Kp * 2 + Hp * 4)
    TL = _choose_row_tile(L, bytes_per_row)
    if TL is None:
        # Rare fallback (L has no multiple-of-8 divisor): replicate pos per row
        # so a full-extent row block stays layout-legal.
        pos_bias = jnp.tile(pos_bias, (R // L, 1))
        L = R
        TL = _choose_row_tile(R, bytes_per_row) or R
    n_row_tiles = L // TL

    # Keep the whole pos+bias table resident in VMEM when cheap: the constant
    # block index lets Pallas DMA it exactly once (vs once per grid step).
    pb_resident = (L * Hp * 4) <= 6 * 2**20
    pb_rows = L if pb_resident else TL
    if pb_resident:
        pb_spec = pl.BlockSpec((L, Hp), lambda i: (0, 0))
    else:
        pb_spec = pl.BlockSpec((TL, Hp), lambda i: (i % n_row_tiles, 0))

    # VMEM limit from the actual working set (with headroom), capped for v7x.
    est = (2 * TL * Kp * 2          # x tiles, bf16, double-buffered
           + 2 * TL * Hp * 4        # out tiles, double-buffered
           + 2 * Kp * Hp * 2        # weight (grid-invariant, 2 buffers allocated)
           + 2 * pb_rows * Hp * 4)  # pos+bias
    vmem_limit = int(min(max(4 * est, 16 * 2**20), 48 * 2**20))

    kernel = functools.partial(_patch_embed_kernel, tl=TL, pb_rows=L,
                               pb_resident=pb_resident)
    return pl.pallas_call(
        kernel,
        out_shape=jax.ShapeDtypeStruct((R, Hp), out_dtype),
        grid_spec=pltpu.PrefetchScalarGridSpec(
            num_scalar_prefetch=0,
            grid=(R // TL,),
            in_specs=[
                pl.BlockSpec((TL, Kp), lambda i: (i, 0)),
                # grid-invariant weight: fetched once, stays resident in VMEM
                pl.BlockSpec((Kp, Hp), lambda i: (0, 0)),
                pb_spec,
            ],
            out_specs=pl.BlockSpec((TL, Hp), lambda i: (i, 0)),
        ),
        compiler_params=pltpu.CompilerParams(
            # every row tile is independent -> shard the one axis across cores
            dimension_semantics=("parallel",),
            vmem_limit_bytes=vmem_limit,
        ),
    )(patches_flat, weight, pos_bias)


# ------------------------------- JAX glue ------------------------------------
def extract_patches(x, patch_size):
    """x: (B, C, D, H, W) -> (B, L, C*pd*ph*pw); token order = (d, h, w) row-major,
    per-patch feature order = (C, pd, ph, pw), matching Conv3d weight flattening."""
    # TODO(synk): fuse this rearrange into the pallas_call (allow_input_fusion on
    # the patches operand, or a pl.ANY input with per-(b, d-token) slab DMA and an
    # in-VMEM reshuffle) to drop one full extra HBM read+write of x.
    B, C, D, H, W = x.shape
    pd, ph, pw = patch_size
    dt, ht, wt = D // pd, H // ph, W // pw
    x = x.reshape(B, C, dt, pd, ht, ph, wt, pw)
    x = jnp.transpose(x, (0, 2, 4, 6, 1, 3, 5, 7))  # (B, dt, ht, wt, C, pd, ph, pw)
    return x.reshape(B, dt * ht * wt, C * pd * ph * pw)


def fourier_pos_encoding(key, tokenized_size, hidden_size):
    """Deterministic Fourier-feature positional encoding: (L, hidden)."""
    dt, ht, wt = tokenized_size
    axes = [jnp.linspace(-1.0, 1.0, n) if n > 1 else jnp.zeros((n,))
            for n in (dt, ht, wt)]
    gd, gh, gw = jnp.meshgrid(*axes, indexing="ij")
    coords = jnp.stack([gd, gh, gw], axis=-1).reshape(-1, 3)          # (L, 3)
    half = (hidden_size + 1) // 2                                     # odd-safe
    bands = jax.random.normal(key, (3, half))                         # (3, half)
    proj = 2.0 * jnp.pi * coords @ bands                              # (L, half)
    enc = jnp.concatenate([jnp.sin(proj), jnp.cos(proj)], axis=-1)
    return enc[:, :hidden_size]                                       # (L, hidden)


class PatchEmbed3dPallas:
    def __init__(self, in_channels, hidden_size, patch_size, img_size, key,
                 out_dtype=jnp.float32):
        self.in_channels = in_channels
        self.hidden_size = hidden_size
        self.patch_size = tuple(patch_size)
        self.img_size = tuple(img_size)
        self.out_dtype = out_dtype        # set to jnp.bfloat16 if downstream is bf16

        pd, ph, pw = self.patch_size
        K = in_channels * pd * ph * pw
        kw, kb, kp = jax.random.split(key, 3)
        # Deterministic init (stand-in for Conv3d.reset_parameters kaiming init)
        bound = 1.0 / jnp.sqrt(K)
        # Conv3d weight layout: (hidden, C, pd, ph, pw) -> (hidden, K) -> (K, hidden)
        w = jax.random.uniform(kw, (hidden_size, in_channels, pd, ph, pw),
                               minval=-bound, maxval=bound, dtype=jnp.float32)
        self.weight_kh = w.reshape(hidden_size, K).T                  # (K, H) f32
        self.bias = jax.random.uniform(kb, (hidden_size,),
                                       minval=-bound, maxval=bound,
                                       dtype=jnp.float32)
        self.pos = fourier_pos_encoding(kp, self.tokenized_size(self.img_size),
                                        hidden_size)                  # (L, H) f32

        # --- kernel-side parameter prep ---------------------------------------
        # Lane-pad hidden only when it is > 128 and not already a multiple of 128;
        # small hidden (e.g. 32) keeps its true width (less write traffic, no slice).
        if hidden_size % 128 == 0 or hidden_size < 128:
            Hp = hidden_size
        else:
            Hp = _round_up(hidden_size, 128)
        # Pad the reduction dim K to a multiple of 128 only when needed.
        Kp = K if K % 128 == 0 else _round_up(K, 128)
        self._K, self._Kp, self._Hp = K, Kp, Hp

        w_pad = jnp.zeros((Kp, Hp), jnp.float32).at[:K, :hidden_size].set(self.weight_kh)
        self._w_bf16 = w_pad.astype(jnp.bfloat16)                     # (Kp, Hp) bf16
        posb = self.pos + self.bias[None, :]                          # fold conv bias
        L = self.pos.shape[0]
        self._pos_bias = (jnp.zeros((L, Hp), jnp.float32)
                          .at[:, :hidden_size].set(posb))             # (L, Hp) f32

    def tokenized_size(self, size):
        return tuple(s // p for s, p in zip(size, self.patch_size))

    def original_size(self, size):
        return tuple(s * p for s, p in zip(size, self.patch_size))

    def __call__(self, x):
        # x: (B, C, D, H, W)  ->  (B, L, hidden)
        # Cast to bf16 BEFORE the rearrange so the XLA transpose moves half the
        # bytes; the matmul still accumulates in f32 on the MXU.  (Result differs
        # from a pure-f32 Conv3d by bf16 operand rounding only.)
        B = x.shape[0]
        patches = extract_patches(x.astype(jnp.bfloat16), self.patch_size)
        L = patches.shape[1]
        flat = patches.reshape(B * L, self._K)          # leading-dim reshape: free
        if self._Kp != self._K:
            flat = jnp.pad(flat, ((0, 0), (0, self._Kp - self._K)))
        y = patch_embed_pallas(flat, self._w_bf16, self._pos_bias,
                               out_dtype=self.out_dtype)
        y = y.reshape(B, L, self._Hp)
        if self._Hp != self.hidden_size:
            y = y[..., :self.hidden_size]
        return y


# --------------------------------- main --------------------------------------
if __name__ == "__main__":
    key = jax.random.PRNGKey(0)
    k_param, k_x = jax.random.split(key)

    in_channels = 4
    hidden_size = 32
    patch_size = (2, 4, 4)
    img_size = (8, 16, 16)      # tokenized -> (4, 4, 4), L = 64, K = 128
    B = 2

    module = PatchEmbed3dPallas(in_channels, hidden_size, patch_size,
                                img_size, k_param)

    x = jax.random.normal(k_x, (B, in_channels, *img_size), dtype=jnp.float32)

    y = jax.block_until_ready(module(x))

    # Sanity check against a pure-f32 JAX reference of the same math
    # (tolerance loosened slightly because the kernel uses bf16 operands).
    patches_ref = extract_patches(x, patch_size)                      # f32
    y_ref = patches_ref @ module.weight_kh + module.bias[None, None, :] \
        + module.pos[None, :, :]
    assert y.shape == (B, 64, hidden_size), y.shape
    max_err = float(jnp.max(jnp.abs(y - y_ref)))
    assert jnp.allclose(y, y_ref, atol=2e-2, rtol=2e-2), max_err

    print("KERNEL_OK")
</pallas_src>

<mosaic_0001>
module attributes {stable_mosaic.version = 11 : i64} {
  func.func @_patch_embed_kernel(%arg0: i32, %arg1: memref<64x128xbf16, #tpu.memory_space<vmem>>, %arg2: memref<128x32xbf16, #tpu.memory_space<vmem>>, %arg3: memref<64x32xf32, #tpu.memory_space<vmem>>, %arg4: memref<64x32xf32, #tpu.memory_space<vmem>>) attributes {dimension_semantics = [#tpu.dimension_semantics<parallel>], iteration_bounds = array<i64: 2>, scalar_prefetch = 0 : i64, scratch_operands = 0 : i64, tpu.core_type = #tpu.core_type<tc>, window_params = [{transform_indices = @transform_0, window_bounds = array<i64: 64, 128>}, {pipeline_mode = #tpu.pipeline_mode<synchronous>, transform_indices = @transform_1, window_bounds = array<i64: 128, 32>}, {pipeline_mode = #tpu.pipeline_mode<synchronous>, transform_indices = @transform_2, window_bounds = array<i64: 64, 32>}, {transform_indices = @transform_3, window_bounds = array<i64: 64, 32>}]} {
    %c0 = arith.constant 0 : index
    %c0_0 = arith.constant 0 : index
    %0 = vector.load %arg1[%c0, %c0_0] : memref<64x128xbf16, #tpu.memory_space<vmem>>, vector<64x128xbf16>
    %c0_1 = arith.constant 0 : index
    %c0_2 = arith.constant 0 : index
    %1 = vector.load %arg2[%c0_1, %c0_2] : memref<128x32xbf16, #tpu.memory_space<vmem>>, vector<128x32xbf16>
    %cst = arith.constant dense<0.000000e+00> : vector<64x32xf32>
    %2 = tpu.matmul %0, %1, %cst {dimension_numbers = #tpu.dot_dimension_numbers<[1], [0], [0], [1], [0, 0, 1, 1], [], []>} : vector<64x128xbf16>, vector<128x32xbf16>, vector<64x32xf32> -> vector<64x32xf32>
    %c0_3 = arith.constant 0 : index
    %c0_4 = arith.constant 0 : index
    %3 = vector.load %arg3[%c0_3, %c0_4] : memref<64x32xf32, #tpu.memory_space<vmem>>, vector<64x32xf32>
    %4 = arith.addf %2, %3 : vector<64x32xf32>
    %c0_5 = arith.constant 0 : index
    %c0_6 = arith.constant 0 : index
    %5 = vector.load %arg4[%c0_5, %c0_6] : memref<64x32xf32, #tpu.memory_space<vmem>>, vector<64x32xf32>
    tpu.vector_store %arg4[%c0_5, %c0_6], %4 {strides = array<i32>} : memref<64x32xf32, #tpu.memory_space<vmem>>, vector<64x32xf32>,
    return
  }
  func.func @transform_0(%arg0: i32) -> (i32, i32) {
    %c0_i32 = arith.constant 0 : i32
    %c0_i32_0 = arith.constant 0 : i32
    return %arg0, %c0_i32 : i32, i32
  }
  func.func @transform_1(%arg0: i32) -> (i32, i32) {
    %c0_i32 = arith.constant 0 : i32
    %c0_i32_0 = arith.constant 0 : i32
    %c0_i32_1 = arith.constant 0 : i32
    return %c0_i32, %c0_i32_0 : i32, i32
  }
  func.func @transform_2(%arg0: i32) -> (i32, i32) {
    %c0_i32 = arith.constant 0 : i32
    %c0_i32_0 = arith.constant 0 : i32
    %c0_i32_1 = arith.constant 0 : i32
    return %c0_i32, %c0_i32_0 : i32, i32
  }
  func.func @transform_3(%arg0: i32) -> (i32, i32) {
    %c0_i32 = arith.constant 0 : i32
    %c0_i32_0 = arith.constant 0 : i32
    return %arg0, %c0_i32 : i32, i32
  }
}

</mosaic_0001>

<llo_original>
// kernel: tpu_custom_call.1
$region0: #{tpu_custom_call.1}
  #allocation0 [shape = 'u32[]', space=smem, size = 0x4, offset = 0x4, fixed_abs, tag = 'smem constant byte address 0x4 - core index']
  #allocation1 [shape = 'u32[72,128]{1,0:T(1,128)}', space=vmem, size = 0x9000, scoped, tag = 'internal scratch']
  %s0 = inlined_call_operand.vmem [shape: bf16[128,128], index: 0, kind: input, shape index: {}]
  %s1 = inlined_call_operand.vmem [shape: bf16[128,32], index: 1, kind: input, shape index: {}]
  %s2 = inlined_call_operand.vmem [shape: f32[64,32], index: 2, kind: input, shape index: {}]
  %s3 = inlined_call_operand.vmem [shape: f32[128,32], index: 3, kind: output, shape index: {}]
  %s4 = sld [smem:[#allocation0]]
  $region45: #{tpu_custom_call.1} parent=0
    _
  %s6 = ssub.s32 1, %s4
  %s7 = scalar_select 0, %s6, %s4
  loop: start=0, step=1, limit=4
  $region2: #{tpu_custom_call.1} parent=0 // loop_pre_header
    _
  $region3: #{tpu_custom_call.1} parent=0 // loop_header
    %s9 = sphi 0, %s13
    %p10 = scmp.ge.s32.totalorder %s9, 4
    %s19 = sphi 0, %s21
    %s22 = sphi 0, %s19
    %s23 = sphi 0, %s22
    %s39 = sphi 0, %s23
    %s43 = sphi 0, %s43
    %s45 = sphi 0, %s43
    %s46 = sphi 0, %s45
    %s60 = sphi 0, %s46
    %s64 = sphi 0, %s64
    %s66 = sphi 0, %s64
    %s67 = sphi 0, %s66
    %s81 = sphi 0, %s67
    %s87 = sphi 0, %s89
    %s90 = sphi 0, %s87
    %s91 = sphi 0, %s90
    %s107 = sphi 0, %s91
  $region4: #{tpu_custom_call.1} parent=0 // loop_header_branch
    %12 = sbr.rel (%p10) target = $region8
  $region5: #{tpu_custom_call.1} parent=0 // loop_body
    %s14 = ssub.s32 %s9, 1
    %s15 = ssub.s32 %s9, 2
    %s16 = sadd.s32 %s9, 1
    %s17 = ssub.s32 %s9, %s16
    %p18 = scmp.eq.s32.totalorder %s17, 0
    %s20 = sadd.s32 %s19, 1
    %s21 = scalar_select %p18, %s19, %s20
    %p24 = pneg %p18
    %p25 = scmp.eq.s32.totalorder %s9, 1
    %p26 = por %p24, %p25
    %p27 = scmp.ne.s32.totalorder %s19, %s22
    %p28 = scmp.eq.s32.totalorder %s9, 0
    %p29 = por %p27, %p28
    %p30 = scmp.ne.s32.totalorder %s19, %s22
    %p31 = scmp.eq.s32.totalorder %s14, 1
    %p32 = por %p30, %p31
    %p33 = scmp.ne.s32.totalorder %s22, %s23
    %p34 = scmp.eq.s32.totalorder %s14, 0
    %p35 = por %p33, %p34
    %p36 = scmp.ne.s32.totalorder %s22, %s23
    %p37 = scmp.eq.s32.totalorder %s15, 1
    %p38 = por %p36, %p37
    %p40 = scmp.ne.s32.totalorder %s23, %s39
    %p41 = scmp.eq.s32.totalorder %s15, 0
    %p42 = por %p40, %p41
    %s44 = sadd.s32 %s43, 1
    %p47 = scmp.eq.s32.totalorder %s9, 1
    %p48 = scmp.ne.s32.totalorder %s43, %s45
    %p49 = scmp.eq.s32.totalorder %s9, 0
    %p50 = por %p48, %p49
    %p51 = scmp.ne.s32.totalorder %s43, %s45
    %p52 = scmp.eq.s32.totalorder %s14, 1
    %p53 = por %p51, %p52
    %p54 = scmp.ne.s32.totalorder %s45, %s46
    %p55 = scmp.eq.s32.totalorder %s14, 0
    %p56 = por %p54, %p55
    %p57 = scmp.ne.s32.totalorder %s45, %s46
    %p58 = scmp.eq.s32.totalorder %s15, 1
    %p59 = por %p57, %p58
    %p61 = scmp.ne.s32.totalorder %s46, %s60
    %p62 = scmp.eq.s32.totalorder %s15, 0
    %p63 = por %p61, %p62
    %s65 = sadd.s32 %s64, 1
    %p68 = scmp.eq.s32.totalorder %s9, 1
    %p69 = scmp.ne.s32.totalorder %s64, %s66
    %p70 = scmp.eq.s32.totalorder %s9, 0
    %p71 = por %p69, %p70
    %p72 = scmp.ne.s32.totalorder %s64, %s66
    %p73 = scmp.eq.s32.totalorder %s14, 1
    %p74 = por %p72, %p73
    %p75 = scmp.ne.s32.totalorder %s66, %s67
    %p76 = scmp.eq.s32.totalorder %s14, 0
    %p77 = por %p75, %p76
    %p78 = scmp.ne.s32.totalorder %s66, %s67
    %p79 = scmp.eq.s32.totalorder %s15, 1
    %p80 = por %p78, %p79
    %p82 = scmp.ne.s32.totalorder %s67, %s81
    %p83 = scmp.eq.s32.totalorder %s15, 0
    %p84 = por %p82, %p83
    %s85 = ssub.s32 %s9, %s16
    %p86 = scmp.eq.s32.totalorder %s85, 0
    %s88 = sadd.s32 %s87, 1
    %s89 = scalar_select %p86, %s87, %s88
    %p92 = pneg %p86
    %p93 = scmp.eq.s32.totalorder %s9, 1
    %p94 = por %p92, %p93
    %p95 = scmp.ne.s32.totalorder %s87, %s90
    %p96 = scmp.eq.s32.totalorder %s9, 0
    %p97 = por %p95, %p96
    %p98 = scmp.ne.s32.totalorder %s87, %s90
    %p99 = scmp.eq.s32.totalorder %s14, 1
    %p100 = por %p98, %p99
    %p101 = scmp.ne.s32.totalorder %s90, %s91
    %p102 = scmp.eq.s32.totalorder %s14, 0
    %p103 = por %p101, %p102
    %p104 = scmp.ne.s32.totalorder %s90, %s91
    %p105 = scmp.eq.s32.totalorder %s15, 1
    %p106 = por %p104, %p105
    %p108 = scmp.ne.s32.totalorder %s91, %s107
    %p109 = scmp.eq.s32.totalorder %s15, 0
    %p110 = por %p108, %p109
    %p111 = scmp.le.s32.totalorder 1, %s9
    %p112 = scmp.lt.s32.totalorder %s9, 3
    %p113 = pnand %p111, %p112
    %p114 = pneg %p113
    // Predicated region
    $region9: #{tpu_custom_call.1} parent=5 // pred_check
      _
    $region10: #{tpu_custom_call.1} parent=5 // pred_check_branch
      %116 = sbr.rel (%p113) target = $region12
    $region11: #{tpu_custom_call.1} parent=5 // pred_region
      %s117 = ssub.s32 %s9, 1
      // Predicated region
      $region13: #{tpu_custom_call.1} parent=11 // pred_check
        %p118 = pneg %p56
      $region14: #{tpu_custom_call.1} parent=11 // pred_check_branch
        %120 = sbr.rel (%p118) target = $region16
      $region15: #{tpu_custom_call.1} parent=11 // pred_region
        _
      $region16: #{tpu_custom_call.1} parent=11 // pred_fallthru
        _
      // Predicated region
      $region17: #{tpu_custom_call.1} parent=11 // pred_check
        %p121 = pneg %p77
      $region18: #{tpu_custom_call.1} parent=11 // pred_check_branch
        %123 = sbr.rel (%p121) target = $region20
      $region19: #{tpu_custom_call.1} parent=11 // pred_region
        _
      $region20: #{tpu_custom_call.1} parent=11 // pred_fallthru
        _
    $region12: #{tpu_custom_call.1} parent=5 // pred_fallthru
      _
    %p124 = scmp.lt.s32.totalorder %s9, 2
    // Predicated region
    $region21: #{tpu_custom_call.1} parent=5 // pred_check
      %p125 = pneg %p124
    $region22: #{tpu_custom_call.1} parent=5 // pred_check_branch
      %127 = sbr.rel (%p125) target = $region24
    $region23: #{tpu_custom_call.1} parent=5 // pred_region
      // Predicated region
      $region25: #{tpu_custom_call.1} parent=23 // pred_check
        %p128 = pneg %p29
      $region26: #{tpu_custom_call.1} parent=23 // pred_check_branch
        %130 = sbr.rel (%p128) target = $region28
      $region27: #{tpu_custom_call.1} parent=23 // pred_region
        %s131 = smul.u32 8, %s9
        %p132 = scmp.lt.s32.totalorder %s131, 15
        %s133 = scalar_select %p132, %s131, 15
        %s134 = smul.addr %s133, 4
        %s135 = scalar_lea.vmem %s0, %s134
        %s136 = smul.u32 8, %s9
      $region28: #{tpu_custom_call.1} parent=23 // pred_fallthru
        _
    $region24: #{tpu_custom_call.1} parent=5 // pred_fallthru
      _
    %p137 = scmp.le.s32.totalorder 1, %s9
    %p138 = scmp.lt.s32.totalorder %s9, 3
    %p139 = pnand %p137, %p138
    %p140 = pneg %p139
    // Predicated region
    $region29: #{tpu_custom_call.1} parent=5 // pred_check
      _
    $region30: #{tpu_custom_call.1} parent=5 // pred_check_branch
      %142 = sbr.rel (%p139) target = $region32
    $region31: #{tpu_custom_call.1} parent=5 // pred_region
      %s143 = ssub.s32 %s9, 1
      %s144 = smul.u32 8, %s14
      %p145 = scmp.lt.s32.totalorder %s144, 15
      %s146 = scalar_select %p145, %s144, 15
      %s147 = smul.addr %s146, 4
      %s148 = scalar_lea.vmem %s0, %s147
      %p149 = pneg %p35
      %p150 = pneg %p32
      %p151 = pneg %p56
      %p152 = pneg %p53
      %p153 = pneg %p77
      %p154 = pneg %p74
      %p155 = pneg %p103
      %p156 = pneg %p100
      %s157 = smul.u32 8, %s14
      %p158 = scmp.lt.s32.totalorder %s157, 15
      %s159 = scalar_select %p158, %s157, 15
      %s160 = smul.addr %s159, 8
      %s161 = scalar_lea.vmem %s3, %s160
      %s162 = smul.u32 8, %s14
      %p163 = scmp.lt.s32.totalorder %s162, 15
      %s164 = scalar_select %p163, %s162, 15
      %s165 = smul.addr %s164, 4
      %s166 = scalar_lea.vmem %s0, %s165
      %s167 = smul.u32 8, %s14
      %s168 = smul.u32 8, %s14
      %p169 = scmp.lt.s32.totalorder %s168, 15
      %s170 = scalar_select %p169, %s168, 15
      %s171 = smul.addr %s170, 8
      %s172 = scalar_lea.vmem %s3, %s171
      %s173 = smul.u32 8, %s14
      %v174 = vld [vmem:[%s166] sm:$0xf]
      %v175 = vld [vmem:[%s166 + $0x4] sm:$0xf]
      %v176 = vld [vmem:[%s166 + $0x8] sm:$0xf]
      %v177 = vld [vmem:[%s166 + $0xc] sm:$0xf]
      %v178 = vld [vmem:[%s166 + $0x10] sm:$0xf]
      %v179 = vld [vmem:[%s166 + $0x14] sm:$0xf]
      %v180 = vld [vmem:[%s166 + $0x18] sm:$0xf]
      %v181 = vld [vmem:[%s166 + $0x1c] sm:$0xf]
      %v182 = vld [vmem:[%s1] sm:$0xf]
      %v183 = vld [vmem:[%s1 + $0x4] sm:$0xf]
      %v184 = vld [vmem:[%s1 + $0x8] sm:$0xf]
      %v185 = vld [vmem:[%s1 + $0xc] sm:$0xf]
      %v186 = vld [vmem:[%s1 + $0x10] sm:$0xf]
      %v187 = vld [vmem:[%s1 + $0x14] sm:$0xf]
      %v188 = vld [vmem:[%s1 + $0x18] sm:$0xf]
      %v189 = vld [vmem:[%s1 + $0x1c] sm:$0xf]
      %v190 = vld [vmem:[%s1 + $0x20] sm:$0xf]
      %v191 = vld [vmem:[%s1 + $0x24] sm:$0xf]
      %v192 = vld [vmem:[%s1 + $0x28] sm:$0xf]
      %v193 = vld [vmem:[%s1 + $0x2c] sm:$0xf]
      %v194 = vld [vmem:[%s1 + $0x30] sm:$0xf]
      %v195 = vld [vmem:[%s1 + $0x34] sm:$0xf]
      %v196 = vld [vmem:[%s1 + $0x38] sm:$0xf]
      %v197 = vld [vmem:[%s1 + $0x3c] sm:$0xf]
      %v198 = vld [vmem:[%s2] sm:$0xff]
      %v199 = vld [vmem:[%s2 + $0x8] sm:$0xff]
      %v200 = vld [vmem:[%s2 + $0x10] sm:$0xff]
      %v201 = vld [vmem:[%s2 + $0x18] sm:$0xff]
      %v202 = vld [vmem:[%s2 + $0x20] sm:$0xff]
      %v203 = vld [vmem:[%s2 + $0x28] sm:$0xff]
      %v204 = vld [vmem:[%s2 + $0x30] sm:$0xff]
      %v205 = vld [vmem:[%s2 + $0x38] sm:$0xff]
      %v214 = vunpack.c.l.b16 %v174
      %v215 = vunpack.c.l.b16 %v175
      %v216 = vunpack.c.l.b16 %v176
      %v217 = vunpack.c.l.b16 %v177
      %v218 = vunpack.c.l.b16 %v178
      %v219 = vunpack.c.l.b16 %v179
      %v220 = vunpack.c.l.b16 %v180
      %v221 = vunpack.c.l.b16 %v181
      %v222 = vpack.c.b16 %v215, %v214
      %v223 = vpack.c.b16 %v217, %v216
      %v224 = vpack.c.b16 %v219, %v218
      %v225 = vpack.c.b16 %v221, %v220
      %v246 = vunpack.c.l.b16 %v182
      %v247 = vunpack.c.l.b16 %v183
      %v248 = vunpack.c.l.b16 %v184
      %v249 = vunpack.c.l.b16 %v185
      %v250 = vunpack.c.l.b16 %v186
      %v251 = vunpack.c.l.b16 %v187
      %v252 = vunpack.c.l.b16 %v188
      %v253 = vunpack.c.l.b16 %v189
      %v254 = vunpack.c.l.b16 %v190
      %v255 = vunpack.c.l.b16 %v191
      %v256 = vunpack.c.l.b16 %v192
      %v257 = vunpack.c.l.b16 %v193
      %v258 = vunpack.c.l.b16 %v194
      %v259 = vunpack.c.l.b16 %v195
      %v260 = vunpack.c.l.b16 %v196
      %v261 = vunpack.c.l.b16 %v197
      %v262 = vpack.c.b16 %v247, %v246
      %v263 = vpack.c.b16 %v249, %v248
      %v264 = vpack.c.b16 %v251, %v250
      %v265 = vpack.c.b16 %v253, %v252
      %v266 = vpack.c.b16 %v255, %v254
      %v267 = vpack.c.b16 %v257, %v256
      %v268 = vpack.c.b16 %v259, %v258
      %v269 = vpack.c.b16 %v261, %v260
      %278 = vmatpush.bf16.msra.mxu0 %v269
      %279 = vmatpush.bf16.msra.mxu0 %v268
      %280 = vmatpush.bf16.msra.mxu0 %v267
      %281 = vmatpush.bf16.msra.mxu0 %v266
      %282 = vmatpush.bf16.msra.mxu0 %v265
      %283 = vmatpush.bf16.msra.mxu0 %v264
      %284 = vmatpush.bf16.msra.mxu0 %v263
      %285 = vmatpush.bf16.msra.mxu0 %v262
      %286 = vmatmul.bf16.gmra.mxu0 %v222
      %v287 = vpop.f32.mrf.mxu0
      %v288 = vadd.f32 %v198, %v287
      %v289 = vpop.f32.mrf.mxu0
      %v290 = vadd.f32 %v199, %v289
      %291 = vmatmul.bf16.gmra.mxu0 %v223
      %v292 = vpop.f32.mrf.mxu0
      %v293 = vadd.f32 %v200, %v292
      %v294 = vpop.f32.mrf.mxu0
      %v295 = vadd.f32 %v201, %v294
      %296 = vmatmul.bf16.gmra.mxu0 %v224
      %v297 = vpop.f32.mrf.mxu0
      %v298 = vadd.f32 %v202, %v297
      %v299 = vpop.f32.mrf.mxu0
      %v300 = vadd.f32 %v203, %v299
      %301 = vmatmul.bf16.gmra.mxu0 %v225
      %v302 = vpop.f32.mrf.mxu0
      %v303 = vadd.f32 %v204, %v302
      %v304 = vpop.f32.mrf.mxu0
      %v305 = vadd.f32 %v205, %v304
      %306 = vdwg.mxu0
      %vm307 = vcmask 261120
      %308 = vst.msk [vmem:[%s172] sm:$0xff] %vm307, %v288
      %309 = vst.msk [vmem:[%s172 + $0x8] sm:$0xff] %vm307, %v290
      %310 = vst.msk [vmem:[%s172 + $0x10] sm:$0xff] %vm307, %v293
      %311 = vst.msk [vmem:[%s172 + $0x18] sm:$0xff] %vm307, %v295
      %312 = vst.msk [vmem:[%s172 + $0x20] sm:$0xff] %vm307, %v298
      %313 = vst.msk [vmem:[%s172 + $0x28] sm:$0xff] %vm307, %v300
      %314 = vst.msk [vmem:[%s172 + $0x30] sm:$0xff] %vm307, %v303
      %315 = vst.msk [vmem:[%s172 + $0x38] sm:$0xff] %vm307, %v305
      %s316 = smul.u32 8, %s14
      %p317 = scmp.lt.s32.totalorder %s316, 15
      %s318 = scalar_select %p317, %s316, 15
      %s319 = smul.addr %s318, 8
      %s320 = scalar_lea.vmem %s3, %s319
      // Predicated region
      $region33: #{tpu_custom_call.1} parent=31 // pred_check
        %p321 = pneg %p100
      $region34: #{tpu_custom_call.1} parent=31 // pred_check_branch
        %323 = sbr.rel (%p321) target = $region36
      $region35: #{tpu_custom_call.1} parent=31 // pred_region
        %s324 = smul.u32 8, %s14
      $region36: #{tpu_custom_call.1} parent=31 // pred_fallthru
        _
    $region32: #{tpu_custom_call.1} parent=5 // pred_fallthru
      _
    %p325 = scmp.le.s32.totalorder 2, %s9
    // Predicated region
    $region37: #{tpu_custom_call.1} parent=5 // pred_check
      %p326 = pneg %p325
    $region38: #{tpu_custom_call.1} parent=5 // pred_check_branch
      %328 = sbr.rel (%p326) target = $region40
    $region39: #{tpu_custom_call.1} parent=5 // pred_region
      %s329 = ssub.s32 %s9, 2
      // Predicated region
      $region41: #{tpu_custom_call.1} parent=39 // pred_check
        %p330 = pneg %p106
      $region42: #{tpu_custom_call.1} parent=39 // pred_check_branch
        %332 = sbr.rel (%p330) target = $region44
      $region43: #{tpu_custom_call.1} parent=39 // pred_region
        %s333 = smul.u32 8, %s15
        %p334 = scmp.lt.s32.totalorder %s333, 15
        %s335 = scalar_select %p334, %s333, 15
        %s336 = smul.addr %s335, 8
        %s337 = scalar_lea.vmem %s3, %s336
      $region44: #{tpu_custom_call.1} parent=39 // pred_fallthru
        _
    $region40: #{tpu_custom_call.1} parent=5 // pred_fallthru
      _
  $region6: #{tpu_custom_call.1} parent=0 // loop_footer
    %s13 = sadd.s32 1, %s9
  $region7: #{tpu_custom_call.1} parent=0 // loop_footer_branch
    %8 = sbr.rel target = $region3
  $region8: #{tpu_custom_call.1} parent=0 // loop_exit
    _

</llo_original>
